<compile_context>
chip_gen: v7x
topology: tpu7x:2x2x1
jax: 0.10.0
libtpu: 0.0.40
codegen_flags: <defaults>
</compile_context>

<pallas_src>
import jax
import jax.numpy as jnp
from jax.experimental import pallas as pl
from jax.experimental.pallas import tpu as pltpu

IN_CHANNELS = 1      # in_channels of CombTR
OUT_CHANNELS = 14    # out_channels of CombTR


def combtr_kernel(x_ref, w_ref, b_ref, o_ref):
    """o[c, n] = w_eff[c] * x[n] + b_eff[c]   (pure VPU fused multiply-add).

    x_ref: (1, tn)             voxels on the 128-lane axis
    w_ref: (OUT_CHANNELS, 1)   effective per-channel scale (lane-broadcast)
    b_ref: (OUT_CHANNELS, 1)   effective per-channel bias  (lane-broadcast)
    o_ref: (OUT_CHANNELS, tn)  lane-dense, final-layout output tile
    """
    # (C,1) * (1,tn) -> (C,tn): sublane-broadcast of x, lane-broadcast of the
    # per-channel scalars.  No MXU, no cross-lane data movement; fully hidden
    # under the output-tile DMA on every TPU generation.
    o_ref[...] = w_ref[...] * x_ref[...] + b_ref[...]


def make_params(key, in_channels=IN_CHANNELS, out_channels=OUT_CHANNELS):
    """Deterministic surrogate weights for the 3 base models + meta model."""
    keys = jax.random.split(key, 8)
    base = []
    for i in range(3):
        w = jax.random.normal(keys[2 * i], (in_channels, out_channels), jnp.float32) * 0.1
        b = jax.random.normal(keys[2 * i + 1], (out_channels,), jnp.float32) * 0.01
        base.append((w, b))
    wm = jax.random.normal(keys[6], (out_channels, out_channels), jnp.float32) * 0.1
    bm = jax.random.normal(keys[7], (out_channels,), jnp.float32) * 0.01
    return {"base": base, "wm": wm, "bm": bm}


def fold_effective_affine(raw):
    """Fold (3 base heads -> mean -> meta head) into one affine map.

    Exact only because the surrogates are linear pointwise convs (see header).
    Returns compact (OUT_CHANNELS, 1) column vectors (no channel padding).
    """
    w_mean = sum(w for w, _ in raw["base"]) / 3.0          # (Cin, Cout)
    b_mean = sum(b for _, b in raw["base"]) / 3.0          # (Cout,)
    w_eff = w_mean @ raw["wm"]                             # (Cin, Cout)
    b_eff = b_mean @ raw["wm"] + raw["bm"]                 # (Cout,)
    assert w_eff.shape[0] == 1, "fused per-channel FMA assumes in_channels == 1"
    w_col = w_eff[0].reshape(-1, 1).astype(jnp.float32)    # (Cout, 1)
    b_col = b_eff.reshape(-1, 1).astype(jnp.float32)       # (Cout, 1)
    return w_col, b_col


def _choose_tile(n_vox, tn_max=65536):
    """Pick the voxel tile size (lane axis).

    Prefer the largest multiple of 128 that divides n_vox exactly (no ragged
    tail, no padding); otherwise fall back to a lane-aligned tile and let
    Pallas handle the ragged last block (OOB input lanes never consumed,
    OOB output lanes masked on writeback).
    """
    cap = max(128, min(tn_max, n_vox))
    best = 0
    t = 128
    while t <= cap:
        if n_vox % t == 0:
            best = t
        t += 128
    if best:
        return best
    return max(128, min(tn_max, pl.cdiv(n_vox, 128) * 128))


def combtr_forward(x, w_col, b_col, out_channels=OUT_CHANNELS, tn_max=65536):
    """x: (B, 1, D, H, W) float32 (NCDHW like PyTorch). Returns (B, Cout, D, H, W)."""
    B, Cin, D, H, W = x.shape
    assert Cin == 1, "CombTR surrogate kernel assumes in_channels == 1"
    n_vox = D * H * W

    tn = _choose_tile(n_vox, tn_max)
    n_tiles = pl.cdiv(n_vox, tn)

    # Free reshape (Cin == 1): voxels of each batch element on one row.
    x3 = x.reshape(B, 1, n_vox)

    out = pl.pallas_call(
        combtr_kernel,
        out_shape=jax.ShapeDtypeStruct((B, out_channels, n_vox), jnp.float32),
        grid_spec=pltpu.PrefetchScalarGridSpec(
            num_scalar_prefetch=0,
            grid=(B, n_tiles),
            in_specs=[
                # voxels: batch dim squeezed, kernel sees (1, tn)
                pl.BlockSpec((None, 1, tn), lambda b, i: (b, 0, i)),
                # effective per-channel scale / bias (constant across grid)
                pl.BlockSpec((out_channels, 1), lambda b, i: (0, 0)),
                pl.BlockSpec((out_channels, 1), lambda b, i: (0, 0)),
            ],
            # final layout written directly; channel block == full dim (14)
            out_specs=pl.BlockSpec((None, out_channels, tn), lambda b, i: (b, 0, i)),
        ),
        compiler_params=pltpu.CompilerParams(
            dimension_semantics=("parallel", "parallel")),
    )(x3, w_col, b_col)

    # Already channel-major: this reshape is free (no transpose, no slice).
    return out.reshape(B, out_channels, D, H, W)


def combtr_reference(x, raw_params, out_channels=OUT_CHANNELS):
    """Pure-JAX reference mirroring CombTR.forward with the same surrogates
    (unfolded: three heads -> stack -> mean over models -> meta head)."""
    B, Cin, D, H, W = x.shape
    xf = jnp.transpose(x, (0, 2, 3, 4, 1)).reshape(-1, Cin)
    ys = [xf @ w + b for (w, b) in raw_params["base"]]
    y_mean = (ys[0] + ys[1] + ys[2]) / 3.0
    out = y_mean @ raw_params["wm"] + raw_params["bm"]
    out = out.reshape(B, D, H, W, out_channels)
    return jnp.transpose(out, (0, 4, 1, 2, 3))


if __name__ == "__main__":
    key = jax.random.PRNGKey(0)
    k_x, k_p = jax.random.split(key)

    # Small shapes consistent with the module: batch=2, in_channels=1,
    # 3-D spatial volume 8x8x8 (stand-in for the 96^3 default).
    B, D, H, W = 2, 8, 8, 8
    x = jax.random.normal(k_x, (B, IN_CHANNELS, D, H, W), jnp.float32)

    raw_params = make_params(k_p)
    w_col, b_col = fold_effective_affine(raw_params)

    out = jax.block_until_ready(combtr_forward(x, w_col, b_col))
    ref = combtr_reference(x, raw_params)

    assert out.shape == (B, OUT_CHANNELS, D, H, W), out.shape
    assert jnp.allclose(out, ref, atol=1e-5, rtol=1e-5), "mismatch vs reference"

    print("KERNEL_OK")
</pallas_src>

<mosaic_0001>
module attributes {stable_mosaic.version = 11 : i64} {
  func.func @combtr_kernel(%arg0: i32, %arg1: i32, %arg2: memref<1x1x512xf32, #tpu.memory_space<vmem>>, %arg3: memref<14x1xf32, #tpu.memory_space<vmem>>, %arg4: memref<14x1xf32, #tpu.memory_space<vmem>>, %arg5: memref<1x14x512xf32, #tpu.memory_space<vmem>>) attributes {dimension_semantics = [#tpu.dimension_semantics<parallel>, #tpu.dimension_semantics<parallel>], iteration_bounds = array<i64: 2, 1>, scalar_prefetch = 0 : i64, scratch_operands = 0 : i64, tpu.core_type = #tpu.core_type<tc>, window_params = [{transform_indices = @transform_0, window_bounds = array<i64: 1, 1, 512>}, {pipeline_mode = #tpu.pipeline_mode<synchronous>, transform_indices = @transform_1, window_bounds = array<i64: 14, 1>}, {pipeline_mode = #tpu.pipeline_mode<synchronous>, transform_indices = @transform_2, window_bounds = array<i64: 14, 1>}, {transform_indices = @transform_3, window_bounds = array<i64: 1, 14, 512>}]} {
    %c0 = arith.constant 0 : index
    %c0_0 = arith.constant 0 : index
    %0 = vector.load %arg3[%c0, %c0_0] : memref<14x1xf32, #tpu.memory_space<vmem>>, vector<14x1xf32>
    %c0_1 = arith.constant 0 : index
    %c0_2 = arith.constant 0 : index
    %c0_3 = arith.constant 0 : index
    %1 = vector.load %arg2[%c0_1, %c0_2, %c0_3] : memref<1x1x512xf32, #tpu.memory_space<vmem>>, vector<1x1x512xf32>
    %2 = vector.shape_cast %1 : vector<1x1x512xf32> to vector<1x512xf32>
    %3 = vector.broadcast %0 : vector<14x1xf32> to vector<14x512xf32>
    %4 = vector.broadcast %2 : vector<1x512xf32> to vector<14x512xf32>
    %5 = arith.mulf %3, %4 : vector<14x512xf32>
    %c0_4 = arith.constant 0 : index
    %c0_5 = arith.constant 0 : index
    %6 = vector.load %arg4[%c0_4, %c0_5] : memref<14x1xf32, #tpu.memory_space<vmem>>, vector<14x1xf32>
    %7 = vector.broadcast %6 : vector<14x1xf32> to vector<14x512xf32>
    %8 = arith.addf %5, %7 : vector<14x512xf32>
    %c0_6 = arith.constant 0 : index
    %c0_7 = arith.constant 0 : index
    %c0_8 = arith.constant 0 : index
    %9 = vector.load %arg5[%c0_6, %c0_7, %c0_8] : memref<1x14x512xf32, #tpu.memory_space<vmem>>, vector<1x14x512xf32>
    %10 = vector.shape_cast %9 : vector<1x14x512xf32> to vector<14x512xf32>
    %11 = vector.shape_cast %8 : vector<14x512xf32> to vector<1x14x512xf32>
    tpu.vector_store %arg5[%c0_6, %c0_7, %c0_8], %11 {strides = array<i32>} : memref<1x14x512xf32, #tpu.memory_space<vmem>>, vector<1x14x512xf32>,
    return
  }
  func.func @transform_0(%arg0: i32, %arg1: i32) -> (i32, i32, i32) {
    %c0_i32 = arith.constant 0 : i32
    %c0_i32_0 = arith.constant 0 : i32
    return %arg0, %c0_i32, %arg1 : i32, i32, i32
  }
  func.func @transform_1(%arg0: i32, %arg1: i32) -> (i32, i32) {
    %c0_i32 = arith.constant 0 : i32
    %c0_i32_0 = arith.constant 0 : i32
    %c0_i32_1 = arith.constant 0 : i32
    return %c0_i32, %c0_i32_0 : i32, i32
  }
  func.func @transform_2(%arg0: i32, %arg1: i32) -> (i32, i32) {
    %c0_i32 = arith.constant 0 : i32
    %c0_i32_0 = arith.constant 0 : i32
    %c0_i32_1 = arith.constant 0 : i32
    return %c0_i32, %c0_i32_0 : i32, i32
  }
  func.func @transform_3(%arg0: i32, %arg1: i32) -> (i32, i32, i32) {
    %c0_i32 = arith.constant 0 : i32
    %c0_i32_0 = arith.constant 0 : i32
    return %arg0, %c0_i32, %arg1 : i32, i32, i32
  }
}

</mosaic_0001>

<llo_original>
// kernel: tpu_custom_call.1
$region0: #{tpu_custom_call.1}
  #allocation0 [shape = 'u32[]', space=smem, size = 0x4, offset = 0x4, fixed_abs, tag = 'smem constant byte address 0x4 - core index']
  #allocation1 [shape = 'u32[144,128]{1,0:T(1,128)}', space=vmem, size = 0x12000, scoped, tag = 'internal scratch']
  %s0 = inlined_call_operand.vmem [shape: f32[2,1,512], index: 0, kind: input, shape index: {}]
  %s1 = inlined_call_operand.vmem [shape: f32[14,1], index: 1, kind: input, shape index: {}]
  %s2 = inlined_call_operand.vmem [shape: f32[14,1], index: 2, kind: input, shape index: {}]
  %s3 = inlined_call_operand.vmem [shape: f32[2,14,512], index: 3, kind: output, shape index: {}]
  %s4 = sld [smem:[#allocation0]]
  $region45: #{tpu_custom_call.1} parent=0
    _
  %s6 = ssub.s32 1, %s4
  %s7 = scalar_select 0, %s6, %s4
  loop: start=0, step=1, limit=4
  $region2: #{tpu_custom_call.1} parent=0 // loop_pre_header
    _
  $region3: #{tpu_custom_call.1} parent=0 // loop_header
    %s9 = sphi 0, %s13
    %p10 = scmp.ge.s32.totalorder %s9, 4
    %s16 = sphi 0, %s28
    %s17 = sphi 0, %s24
    %s18 = sphi 0, %s16
    %s19 = sphi 0, %s17
    %s20 = sphi 0, %s18
    %s21 = sphi 0, %s19
    %s33 = sphi 0, %s35
    %s36 = sphi 0, %s33
    %s37 = sphi 0, %s36
    %s53 = sphi 0, %s37
    %s57 = sphi 0, %s57
    %s59 = sphi 0, %s57
    %s60 = sphi 0, %s59
    %s74 = sphi 0, %s60
    %s78 = sphi 0, %s78
    %s80 = sphi 0, %s78
    %s81 = sphi 0, %s80
    %s95 = sphi 0, %s81
    %s103 = sphi 0, %s105
    %s106 = sphi 0, %s103
    %s107 = sphi 0, %s106
    %s123 = sphi 0, %s107
  $region4: #{tpu_custom_call.1} parent=0 // loop_header_branch
    %12 = sbr.rel (%p10) target = $region8
  $region5: #{tpu_custom_call.1} parent=0 // loop_body
    %s14 = ssub.s32 %s9, 1
    %s15 = ssub.s32 %s9, 2
    %s22 = sadd.s32 1, %s17
    %p23 = scmp.ge.s32.totalorder %s22, 1
    %s24 = scalar_select %p23, 0, %s22
    %s25 = sadd.s32 1, %s16
    %s26 = scalar_select %p23, %s25, %s16
    %p27 = scmp.ge.s32.totalorder %s26, 2
    %s28 = scalar_select %p27, 0, %s26
    %s29 = ssub.s32 %s16, %s28
    %s30 = ssub.s32 %s17, %s24
    %s31 = sor.u32 %s29, %s30
    %p32 = scmp.eq.s32.totalorder %s31, 0
    %s34 = sadd.s32 %s33, 1
    %s35 = scalar_select %p32, %s33, %s34
    %p38 = pneg %p32
    %p39 = scmp.eq.s32.totalorder %s9, 1
    %p40 = por %p38, %p39
    %p41 = scmp.ne.s32.totalorder %s33, %s36
    %p42 = scmp.eq.s32.totalorder %s9, 0
    %p43 = por %p41, %p42
    %p44 = scmp.ne.s32.totalorder %s33, %s36
    %p45 = scmp.eq.s32.totalorder %s14, 1
    %p46 = por %p44, %p45
    %p47 = scmp.ne.s32.totalorder %s36, %s37
    %p48 = scmp.eq.s32.totalorder %s14, 0
    %p49 = por %p47, %p48
    %p50 = scmp.ne.s32.totalorder %s36, %s37
    %p51 = scmp.eq.s32.totalorder %s15, 1
    %p52 = por %p50, %p51
    %p54 = scmp.ne.s32.totalorder %s37, %s53
    %p55 = scmp.eq.s32.totalorder %s15, 0
    %p56 = por %p54, %p55
    %s58 = sadd.s32 %s57, 1
    %p61 = scmp.eq.s32.totalorder %s9, 1
    %p62 = scmp.ne.s32.totalorder %s57, %s59
    %p63 = scmp.eq.s32.totalorder %s9, 0
    %p64 = por %p62, %p63
    %p65 = scmp.ne.s32.totalorder %s57, %s59
    %p66 = scmp.eq.s32.totalorder %s14, 1
    %p67 = por %p65, %p66
    %p68 = scmp.ne.s32.totalorder %s59, %s60
    %p69 = scmp.eq.s32.totalorder %s14, 0
    %p70 = por %p68, %p69
    %p71 = scmp.ne.s32.totalorder %s59, %s60
    %p72 = scmp.eq.s32.totalorder %s15, 1
    %p73 = por %p71, %p72
    %p75 = scmp.ne.s32.totalorder %s60, %s74
    %p76 = scmp.eq.s32.totalorder %s15, 0
    %p77 = por %p75, %p76
    %s79 = sadd.s32 %s78, 1
    %p82 = scmp.eq.s32.totalorder %s9, 1
    %p83 = scmp.ne.s32.totalorder %s78, %s80
    %p84 = scmp.eq.s32.totalorder %s9, 0
    %p85 = por %p83, %p84
    %p86 = scmp.ne.s32.totalorder %s78, %s80
    %p87 = scmp.eq.s32.totalorder %s14, 1
    %p88 = por %p86, %p87
    %p89 = scmp.ne.s32.totalorder %s80, %s81
    %p90 = scmp.eq.s32.totalorder %s14, 0
    %p91 = por %p89, %p90
    %p92 = scmp.ne.s32.totalorder %s80, %s81
    %p93 = scmp.eq.s32.totalorder %s15, 1
    %p94 = por %p92, %p93
    %p96 = scmp.ne.s32.totalorder %s81, %s95
    %p97 = scmp.eq.s32.totalorder %s15, 0
    %p98 = por %p96, %p97
    %s99 = ssub.s32 %s16, %s28
    %s100 = ssub.s32 %s17, %s24
    %s101 = sor.u32 %s99, %s100
    %p102 = scmp.eq.s32.totalorder %s101, 0
    %s104 = sadd.s32 %s103, 1
    %s105 = scalar_select %p102, %s103, %s104
    %p108 = pneg %p102
    %p109 = scmp.eq.s32.totalorder %s9, 1
    %p110 = por %p108, %p109
    %p111 = scmp.ne.s32.totalorder %s103, %s106
    %p112 = scmp.eq.s32.totalorder %s9, 0
    %p113 = por %p111, %p112
    %p114 = scmp.ne.s32.totalorder %s103, %s106
    %p115 = scmp.eq.s32.totalorder %s14, 1
    %p116 = por %p114, %p115
    %p117 = scmp.ne.s32.totalorder %s106, %s107
    %p118 = scmp.eq.s32.totalorder %s14, 0
    %p119 = por %p117, %p118
    %p120 = scmp.ne.s32.totalorder %s106, %s107
    %p121 = scmp.eq.s32.totalorder %s15, 1
    %p122 = por %p120, %p121
    %p124 = scmp.ne.s32.totalorder %s107, %s123
    %p125 = scmp.eq.s32.totalorder %s15, 0
    %p126 = por %p124, %p125
    %p127 = scmp.le.s32.totalorder 1, %s9
    %p128 = scmp.lt.s32.totalorder %s9, 3
    %p129 = pnand %p127, %p128
    %p130 = pneg %p129
    // Predicated region
    $region9: #{tpu_custom_call.1} parent=5 // pred_check
      _
    $region10: #{tpu_custom_call.1} parent=5 // pred_check_branch
      %132 = sbr.rel (%p129) target = $region12
    $region11: #{tpu_custom_call.1} parent=5 // pred_region
      %s133 = ssub.s32 %s9, 1
      // Predicated region
      $region13: #{tpu_custom_call.1} parent=11 // pred_check
        %p134 = pneg %p70
      $region14: #{tpu_custom_call.1} parent=11 // pred_check_branch
        %136 = sbr.rel (%p134) target = $region16
      $region15: #{tpu_custom_call.1} parent=11 // pred_region
        _
      $region16: #{tpu_custom_call.1} parent=11 // pred_fallthru
        _
      // Predicated region
      $region17: #{tpu_custom_call.1} parent=11 // pred_check
        %p137 = pneg %p91
      $region18: #{tpu_custom_call.1} parent=11 // pred_check_branch
        %139 = sbr.rel (%p137) target = $region20
      $region19: #{tpu_custom_call.1} parent=11 // pred_region
        _
      $region20: #{tpu_custom_call.1} parent=11 // pred_fallthru
        _
    $region12: #{tpu_custom_call.1} parent=5 // pred_fallthru
      _
    %p140 = scmp.lt.s32.totalorder %s9, 2
    // Predicated region
    $region21: #{tpu_custom_call.1} parent=5 // pred_check
      %p141 = pneg %p140
    $region22: #{tpu_custom_call.1} parent=5 // pred_check_branch
      %143 = sbr.rel (%p141) target = $region24
    $region23: #{tpu_custom_call.1} parent=5 // pred_region
      // Predicated region
      $region25: #{tpu_custom_call.1} parent=23 // pred_check
        %p144 = pneg %p43
      $region26: #{tpu_custom_call.1} parent=23 // pred_check_branch
        %146 = sbr.rel (%p144) target = $region28
      $region27: #{tpu_custom_call.1} parent=23 // pred_region
        %s147 = smul.u32 4, %s17
        %p148 = scmp.lt.s32.totalorder %s16, 1
        %s149 = scalar_select %p148, %s16, 1
        %p150 = scmp.lt.s32.totalorder %s147, 3
        %s151 = scalar_select %p150, %s147, 3
        %s152 = smul.addr %s149, 4
        %s153 = sadd.s32 %s151, %s152
        %s154 = scalar_lea.vmem %s0, %s153
        %s155 = smul.u32 4, %s17
      $region28: #{tpu_custom_call.1} parent=23 // pred_fallthru
        _
    $region24: #{tpu_custom_call.1} parent=5 // pred_fallthru
      _
    %p156 = scmp.le.s32.totalorder 1, %s9
    %p157 = scmp.lt.s32.totalorder %s9, 3
    %p158 = pnand %p156, %p157
    %p159 = pneg %p158
    // Predicated region
    $region29: #{tpu_custom_call.1} parent=5 // pred_check
      _
    $region30: #{tpu_custom_call.1} parent=5 // pred_check_branch
      %161 = sbr.rel (%p158) target = $region32
    $region31: #{tpu_custom_call.1} parent=5 // pred_region
      %s162 = ssub.s32 %s9, 1
      %s163 = smul.u32 4, %s19
      %p164 = scmp.lt.s32.totalorder %s18, 1
      %s165 = scalar_select %p164, %s18, 1
      %p166 = scmp.lt.s32.totalorder %s163, 3
      %s167 = scalar_select %p166, %s163, 3
      %s168 = smul.addr %s165, 4
      %s169 = sadd.s32 %s167, %s168
      %s170 = scalar_lea.vmem %s0, %s169
      %p171 = pneg %p49
      %p172 = pneg %p46
      %p173 = pneg %p70
      %p174 = pneg %p67
      %p175 = pneg %p91
      %p176 = pneg %p88
      %p177 = pneg %p119
      %p178 = pneg %p116
      %s179 = smul.u32 4, %s19
      %p180 = scmp.lt.s32.totalorder %s18, 1
      %s181 = scalar_select %p180, %s18, 1
      %p182 = scmp.lt.s32.totalorder %s179, 3
      %s183 = scalar_select %p182, %s179, 3
      %s184 = smul.addr %s181, 8
      %s185 = sadd.s32 %s183, %s184
      %s186 = smul.addr %s185, 8
      %s187 = scalar_lea.vmem %s3, %s186
      %s188 = smul.u32 4, %s19
      %p189 = scmp.lt.s32.totalorder %s18, 1
      %s190 = scalar_select %p189, %s18, 1
      %p191 = scmp.lt.s32.totalorder %s188, 3
      %s192 = scalar_select %p191, %s188, 3
      %s193 = smul.addr %s190, 4
      %s194 = sadd.s32 %s192, %s193
      %s195 = scalar_lea.vmem %s0, %s194
      %s196 = smul.u32 4, %s19
      %s197 = smul.u32 4, %s19
      %p198 = scmp.lt.s32.totalorder %s18, 1
      %s199 = scalar_select %p198, %s18, 1
      %p200 = scmp.lt.s32.totalorder %s197, 3
      %s201 = scalar_select %p200, %s197, 3
      %s202 = smul.addr %s199, 8
      %s203 = sadd.s32 %s201, %s202
      %s204 = smul.addr %s203, 8
      %s205 = scalar_lea.vmem %s3, %s204
      %s206 = smul.u32 4, %s19
      %v207 = vld [vmem:[%s1] sm:$0xff]
      %v208 = vld [vmem:[%s1 + $0x8] sm:$0x3f]
      %v209 = vld [vmem:[%s195] sm:$0xf]
      %211 = vset.pattern.permute.xlu0 0
      %212 = vperm.xlu0 %211, %v207
      %v213 = vpop.permute.xlu0 %212
      %216 = vset.pattern.permute.xlu0 0
      %217 = vperm.xlu0 %216, %v208
      %v218 = vpop.permute.xlu0 %217
      %v221 = vlaneseq
      %v222 = vshrl.u32 %v221, 7
      %v223 = vsub.s32 0, %v222
      %v224 = vrot.slane %v209, %v223
      %v225 = vlaneseq
      %v226 = vshrl.u32 %v225, 7
      %v227 = vsub.s32 1, %v226
      %v228 = vrot.slane %v209, %v227
      %v229 = vlaneseq
      %v230 = vshrl.u32 %v229, 7
      %v231 = vsub.s32 2, %v230
      %v232 = vrot.slane %v209, %v231
      %v233 = vlaneseq
      %v234 = vshrl.u32 %v233, 7
      %v235 = vsub.s32 3, %v234
      %v236 = vrot.slane %v209, %v235
      %v241 = vmul.f32 %v213, %v224
      %v242 = vmul.f32 %v213, %v228
      %v243 = vmul.f32 %v213, %v232
      %v244 = vmul.f32 %v213, %v236
      %v245 = vmul.f32 %v218, %v224
      %v246 = vmul.f32 %v218, %v228
      %v247 = vmul.f32 %v218, %v232
      %v248 = vmul.f32 %v218, %v236
      %v249 = vld [vmem:[%s2] sm:$0xff]
      %v250 = vld [vmem:[%s2 + $0x8] sm:$0x3f]
      %252 = vset.pattern.permute.xlu0 0
      %253 = vperm.xlu0 %252, %v249
      %v254 = vpop.permute.xlu0 %253
      %257 = vset.pattern.permute.xlu0 0
      %258 = vperm.xlu0 %257, %v250
      %v259 = vpop.permute.xlu0 %258
      %v261 = vadd.f32 %v241, %v254
      %v262 = vadd.f32 %v242, %v254
      %v263 = vadd.f32 %v243, %v254
      %v264 = vadd.f32 %v244, %v254
      %v265 = vadd.f32 %v245, %v259
      %v266 = vadd.f32 %v246, %v259
      %v267 = vadd.f32 %v247, %v259
      %v268 = vadd.f32 %v248, %v259
      %269 = vst [vmem:[%s205] sm:$0xff] %v261
      %270 = vst [vmem:[%s205 + $0x8] sm:$0xff] %v262
      %271 = vst [vmem:[%s205 + $0x10] sm:$0xff] %v263
      %272 = vst [vmem:[%s205 + $0x18] sm:$0xff] %v264
      %273 = vst [vmem:[%s205 + $0x20] sm:$0x3f] %v265
      %274 = vst [vmem:[%s205 + $0x28] sm:$0x3f] %v266
      %275 = vst [vmem:[%s205 + $0x30] sm:$0x3f] %v267
      %276 = vst [vmem:[%s205 + $0x38] sm:$0x3f] %v268
      %s277 = smul.u32 4, %s19
      %p278 = scmp.lt.s32.totalorder %s18, 1
      %s279 = scalar_select %p278, %s18, 1
      %p280 = scmp.lt.s32.totalorder %s277, 3
      %s281 = scalar_select %p280, %s277, 3
      %s282 = smul.addr %s279, 8
      %s283 = sadd.s32 %s281, %s282
      %s284 = smul.addr %s283, 8
      %s285 = scalar_lea.vmem %s3, %s284
      // Predicated region
      $region33: #{tpu_custom_call.1} parent=31 // pred_check
        %p286 = pneg %p116
      $region34: #{tpu_custom_call.1} parent=31 // pred_check_branch
        %288 = sbr.rel (%p286) target = $region36
      $region35: #{tpu_custom_call.1} parent=31 // pred_region
        %s289 = smul.u32 4, %s19
      $region36: #{tpu_custom_call.1} parent=31 // pred_fallthru
        _
    $region32: #{tpu_custom_call.1} parent=5 // pred_fallthru
      _
    %p290 = scmp.le.s32.totalorder 2, %s9
    // Predicated region
    $region37: #{tpu_custom_call.1} parent=5 // pred_check
      %p291 = pneg %p290
    $region38: #{tpu_custom_call.1} parent=5 // pred_check_branch
      %293 = sbr.rel (%p291) target = $region40
    $region39: #{tpu_custom_call.1} parent=5 // pred_region
      %s294 = ssub.s32 %s9, 2
      // Predicated region
      $region41: #{tpu_custom_call.1} parent=39 // pred_check
        %p295 = pneg %p122
      $region42: #{tpu_custom_call.1} parent=39 // pred_check_branch
        %297 = sbr.rel (%p295) target = $region44
      $region43: #{tpu_custom_call.1} parent=39 // pred_region
        %s298 = smul.u32 4, %s21
        %p299 = scmp.lt.s32.totalorder %s20, 1
        %s300 = scalar_select %p299, %s20, 1
        %p301 = scmp.lt.s32.totalorder %s298, 3
        %s302 = scalar_select %p301, %s298, 3
        %s303 = smul.addr %s300, 8
        %s304 = sadd.s32 %s302, %s303
        %s305 = smul.addr %s304, 8
        %s306 = scalar_lea.vmem %s3, %s305
      $region44: #{tpu_custom_call.1} parent=39 // pred_fallthru
        _
    $region40: #{tpu_custom_call.1} parent=5 // pred_fallthru
      _
  $region6: #{tpu_custom_call.1} parent=0 // loop_footer
    %s13 = sadd.s32 1, %s9
  $region7: #{tpu_custom_call.1} parent=0 // loop_footer_branch
    %8 = sbr.rel target = $region3
  $region8: #{tpu_custom_call.1} parent=0 // loop_exit
    _

</llo_original>
